<compile_context>
chip_gen: v6e
topology: v6e:2x2x1
jax: 0.10.0
libtpu: 0.0.40
codegen_flags: <defaults>
</compile_context>

<pallas_src>
import jax
import jax.numpy as jnp
from jax.experimental import pallas as pl
from jax.experimental.pallas import tpu as pltpu

LANE = 128
# ~2 MiB per tile -> (in + out) x double-buffer = 8 MiB VMEM, safe on v5e/v6e/v7x.
_TARGET_BLOCK_BYTES = 2 * 1024 * 1024


def _mul_kernel(w_ref, x_ref, o_ref):
    # w_ref: (1, 1) scalar weight in SMEM; x_ref / o_ref: (TM, COLS) VMEM tiles.
    o_ref[...] = x_ref[...] * w_ref[0, 0]


def _tiled_call(x2d, w, tm):
    """Run the scalar-multiply kernel over a (rows, cols) lane-dense 2D view."""
    rows, cols = x2d.shape
    dtype = x2d.dtype
    itemsize = jnp.dtype(dtype).itemsize
    grid = (pl.cdiv(rows, tm),)
    return pl.pallas_call(
        _mul_kernel,
        out_shape=jax.ShapeDtypeStruct((rows, cols), dtype),
        grid_spec=pl.GridSpec(
            grid=grid,
            in_specs=[
                pl.BlockSpec(memory_space=pltpu.SMEM),       # scalar weight
                pl.BlockSpec((tm, cols), lambda i: (i, 0)),  # input tile
            ],
            out_specs=pl.BlockSpec((tm, cols), lambda i: (i, 0)),
        ),
        compiler_params=pltpu.CompilerParams(
            dimension_semantics=("parallel",),  # shards grid across v7x's 2 TCs
        ),
        cost_estimate=pl.CostEstimate(
            flops=rows * cols,
            transcendentals=0,
            bytes_accessed=2 * rows * cols * itemsize,
        ),
    )(w, x2d)


def mul_pallas(x, weight):
    """Compute x * weight (scalar weight) with a Pallas TPU kernel."""
    orig_shape = x.shape
    dtype = x.dtype
    n = x.size

    # PyTorch: python-float scalar * float tensor keeps the tensor dtype.
    w = jnp.asarray(weight, dtype=dtype).reshape(1, 1)
    if n == 0:
        return (x * w[0, 0]).reshape(orig_shape)

    itemsize = jnp.dtype(dtype).itemsize
    pack = 8 * max(1, 4 // itemsize)  # sublane packing: 8 f32, 16 bf16, 32 int8/fp8
    max_block_elems = max(1, _TARGET_BLOCK_BYTES // itemsize)

    flat = x.reshape(-1)

    # Pick a lane-dense factorization n = rows * cols with cols a large multiple of
    # 128 that divides n exactly: no padding round-trip, wide unmasked stores.
    cols = 0
    for c in (32768, 16384, 8192, 4096, 2048, 1024, 512, 256, 128):
        if c <= max_block_elems and n % c == 0:
            cols = c
            break

    if cols:
        rows = n // cols
        tm = max(pack, (max_block_elems // cols) // pack * pack)
        tm = min(tm, rows)
        if tm % pack != 0:
            tm = rows  # rows < pack: full-extent sublane block, grid = (1,)
        out2d = _tiled_call(flat.reshape(rows, cols), w, tm)
        return out2d.reshape(orig_shape)

    # n has no multiple-of-128 factor.
    if n * itemsize <= 4 * 1024 * 1024:
        # Small tensor fast path: one whole-array block, one DMA in / one DMA out.
        out2d = _tiled_call(flat.reshape(1, n), w, 1)
        return out2d.reshape(orig_shape)

    # Large & ragged size: pad to an aligned 2D view (extra copy; rare path).
    # TODO(synk): a Pallas bulk + XLA remainder split would avoid the padding copy.
    rows_p = pl.cdiv(pl.cdiv(n, LANE), pack) * pack
    padded = rows_p * LANE
    flat_p = jnp.concatenate([flat, jnp.zeros((padded - n,), dtype=dtype)])
    tm = min(max(pack, (max_block_elems // LANE) // pack * pack), rows_p)
    out2d = _tiled_call(flat_p.reshape(rows_p, LANE), w, tm)
    return out2d.reshape(-1)[:n].reshape(orig_shape)


if __name__ == "__main__":
    key = jax.random.PRNGKey(0)
    # Small NCHW input consistent with a CIFAR-style conv feature map.
    x = jax.random.normal(key, (2, 4, 16, 16), dtype=jnp.float32)

    # Deterministic scalar "weight" parameter (the module just stores a scalar).
    weight = 0.2

    out = mul_pallas(x, weight)
    out = jax.block_until_ready(out)

    # Verify against the reference semantics: x * weight.
    ref = x * jnp.float32(weight)
    assert out.shape == x.shape
    assert jnp.allclose(out, ref, atol=1e-6, rtol=1e-6)

    print("KERNEL_OK")
</pallas_src>

<mosaic_0001>
module attributes {stable_mosaic.version = 11 : i64} {
  func.func @_mul_kernel(%arg0: i32, %arg1: memref<1x1xf32, #tpu.memory_space<smem>>, %arg2: memref<1x2048xf32, #tpu.memory_space<vmem>>, %arg3: memref<1x2048xf32, #tpu.memory_space<vmem>>) attributes {dimension_semantics = [#tpu.dimension_semantics<parallel>], iteration_bounds = array<i64: 1>, scalar_prefetch = 0 : i64, scratch_operands = 0 : i64, tpu.core_type = #tpu.core_type<tc>, window_params = [{transform_indices = @transform_0, window_bounds = array<i64: 1, 1>}, {transform_indices = @transform_1, window_bounds = array<i64: 1, 2048>}, {transform_indices = @transform_2, window_bounds = array<i64: 1, 2048>}]} {
    %c0 = arith.constant 0 : index
    %c0_0 = arith.constant 0 : index
    %0 = vector.load %arg2[%c0, %c0_0] : memref<1x2048xf32, #tpu.memory_space<vmem>>, vector<1x2048xf32>
    %c0_1 = arith.constant 0 : index
    %c0_2 = arith.constant 0 : index
    %1 = memref.load %arg1[%c0_1, %c0_2] : memref<1x1xf32, #tpu.memory_space<smem>>
    %2 = vector.broadcast %1 : f32 to vector<1x2048xf32>
    %3 = arith.mulf %0, %2 : vector<1x2048xf32>
    %c0_3 = arith.constant 0 : index
    %c0_4 = arith.constant 0 : index
    %4 = vector.load %arg3[%c0_3, %c0_4] : memref<1x2048xf32, #tpu.memory_space<vmem>>, vector<1x2048xf32>
    tpu.vector_store %arg3[%c0_3, %c0_4], %3 {strides = array<i32>} : memref<1x2048xf32, #tpu.memory_space<vmem>>, vector<1x2048xf32>,
    return
  }
  func.func @transform_0(%arg0: i32) -> (i32, i32) {
    %c0_i32 = arith.constant 0 : i32
    %c0_i32_0 = arith.constant 0 : i32
    %c0_i32_1 = arith.constant 0 : i32
    return %c0_i32, %c0_i32_0 : i32, i32
  }
  func.func @transform_1(%arg0: i32) -> (i32, i32) {
    %c0_i32 = arith.constant 0 : i32
    %c0_i32_0 = arith.constant 0 : i32
    return %arg0, %c0_i32 : i32, i32
  }
  func.func @transform_2(%arg0: i32) -> (i32, i32) {
    %c0_i32 = arith.constant 0 : i32
    %c0_i32_0 = arith.constant 0 : i32
    return %arg0, %c0_i32 : i32, i32
  }
}

</mosaic_0001>

<llo_original>
// kernel: tpu_custom_call.1
$region0: #{tpu_custom_call.1}
  #allocation0 [shape = 'u32[]', space=smem, size = 0x4, offset = 0x4, fixed_abs, tag = 'smem constant byte address 0x4 - core index']
  #allocation1 [shape = 'u32[144,128]{1,0:T(1,128)}', space=vmem, size = 0x12000, scoped, tag = 'internal scratch']
  #allocation2 [shape = 'f32[1,1]{1,0:T(1,128)S(6)}', space=smem, size = 0x200, scoped, tag = 'scoped memory for tpu_custom_call.1']
  %s0 = inlined_call_operand.<no memory space> [shape: f32[1,1], index: 0, kind: input, shape index: {}]
  %s1 = inlined_call_operand.hbm [shape: f32[1,2048], index: 1, kind: input, shape index: {}]
  %s2 = inlined_call_operand.hbm [shape: f32[1,2048], index: 2, kind: output, shape index: {}]
  %s3 = sld [smem:[#allocation0]]
  $region22: #{tpu_custom_call.1} parent=0
    _
  %s5 = ssub.s32 1, %s3
  %s6 = scalar_select 0, %s5, %s3
  %7 = sst [smem:[#allocation2]] %s0
  $region1: #{tpu_custom_call.1} parent=0
    #allocation3 [shape = 'u8[8192]{0}', space=vmem, size = 0x2000, scoped, tag = 'input window, operand 1, single buffered']
    #allocation4 [shape = 's32[1]{0}', space=sflag, size = 0x4, scoped, tag = 'scoped memory for tpu_custom_call.1']
    #allocation5 [shape = 's32[1]{0}', space=sflag, size = 0x4, scoped, tag = 'scoped memory for tpu_custom_call.1']
    #allocation6 [shape = 'u8[8192]{0}', space=vmem, size = 0x2000, scoped, tag = 'output window, operand 0, single buffered']
    %8 = vsyncpa [#allocation4], 0
    %9 = vsyncpa [#allocation5], 0
    // Predicated region
    $region2: #{tpu_custom_call.1} parent=1 // pred_check
      _
    $region3: #{tpu_custom_call.1} parent=1 // pred_check_branch
      %11 = sbr.rel (0) target = $region5
    $region4: #{tpu_custom_call.1} parent=1 // pred_region
      _
    $region5: #{tpu_custom_call.1} parent=1 // pred_fallthru
      _
    // Predicated region
    $region6: #{tpu_custom_call.1} parent=1 // pred_check
      _
    $region7: #{tpu_custom_call.1} parent=1 // pred_check_branch
      %13 = sbr.rel (0) target = $region9
    $region8: #{tpu_custom_call.1} parent=1 // pred_region
      %s15 = ssub.s32 256, 256
      %16 = vsyncadd [#allocation4], %s15
      %s18 = sshll.u32 [#allocation3], 4
      %s19 = int_to_ptr.vmem [resolvable:$true] %s18
      %21 = dma.hbm_to_vmem [thread:$0]  %s1, 256, %s19, [#allocation4]
    $region9: #{tpu_custom_call.1} parent=1 // pred_fallthru
      _
    // Predicated region
    $region10: #{tpu_custom_call.1} parent=1 // pred_check
      _
    $region11: #{tpu_custom_call.1} parent=1 // pred_check_branch
      %23 = sbr.rel (0) target = $region13
    $region12: #{tpu_custom_call.1} parent=1 // pred_region
      %24 = dma.done [#allocation4], 256
    $region13: #{tpu_custom_call.1} parent=1 // pred_fallthru
      _
    %v25 = vld [vmem:[#allocation3] sm:$0xff]
    %v26 = vld [vmem:[#allocation3 + $0x8] sm:$0xff]
    %s27 = sld [smem:[#allocation2]]
    %v28 = vstv %s27
    %v29 = vmul.f32 %v25, %v28
    %v30 = vmul.f32 %v26, %v28
    %31 = vst [vmem:[#allocation6] sm:$0xff] %v29
    %32 = vst [vmem:[#allocation6 + $0x8] sm:$0xff] %v30
    // Predicated region
    $region14: #{tpu_custom_call.1} parent=1 // pred_check
      _
    $region15: #{tpu_custom_call.1} parent=1 // pred_check_branch
      %34 = sbr.rel (0) target = $region17
    $region16: #{tpu_custom_call.1} parent=1 // pred_region
      %s36 = ssub.s32 256, 256
      %37 = vsyncadd [#allocation5], %s36
      %s39 = sshll.u32 [#allocation6], 4
      %s40 = int_to_ptr.vmem [resolvable:$true] %s39
      %42 = dma.vmem_to_hbm [thread:$0]  %s40, 256, %s2, [#allocation5]
    $region17: #{tpu_custom_call.1} parent=1 // pred_fallthru
      _
    // Predicated region
    $region18: #{tpu_custom_call.1} parent=1 // pred_check
      _
    $region19: #{tpu_custom_call.1} parent=1 // pred_check_branch
      %44 = sbr.rel (0) target = $region21
    $region20: #{tpu_custom_call.1} parent=1 // pred_region
      %45 = dma.done [#allocation5], 256
    $region21: #{tpu_custom_call.1} parent=1 // pred_fallthru
      _
    %46 = vsyncpa [#allocation4], 1
    %47 = vsyncpa [#allocation5], 1

</llo_original>
